<compile_context>
chip_gen: v7x
topology: tpu7x:2x2x1
jax: 0.10.0
libtpu: 0.0.40
codegen_flags: <defaults>
</compile_context>

<pallas_src>
import math
import functools

import jax
import jax.numpy as jnp
from jax.experimental import pallas as pl
from jax.experimental.pallas import tpu as pltpu


def _round_up(x: int, m: int) -> int:
    return ((x + m - 1) // m) * m


def _cdiv(a: int, b: int) -> int:
    return -(-a // b)


def _vmem_limit_bytes() -> int:
    """Generation-aware VMEM limit: ~96 MiB on v5e/v6e (128 MiB VMEM),
    ~40 MiB on v7x (64 MiB per TensorCore)."""
    cap = 64 * 1024 * 1024  # conservative default (v7x per-TC VMEM)
    try:
        info = pltpu.get_tpu_info()
        cap_attr = getattr(info, "vmem_capacity_bytes", None)
        if cap_attr:
            cap = int(cap_attr)
    except Exception:
        pass
    # Leave ~24 MiB headroom for Mosaic internal scratch / second buffer sets.
    return max(32 * 1024 * 1024, min(96 * 1024 * 1024, cap - 24 * 1024 * 1024))


# ---------------------------------------------------------------------------
# Kernels
# ---------------------------------------------------------------------------
def gcn_fast_kernel(x_ref, w_ref, b_ref, o_ref):
    """Weight-resident path: one node tile per grid step, no K reduction."""
    o_ref[...] = (
        jnp.dot(x_ref[...], w_ref[...], preferred_element_type=jnp.float32)
        + b_ref[...]
    ).astype(o_ref.dtype)


def gcn_tiled_kernel_f32out(x_ref, w_ref, b_ref, o_ref):
    """Tiled matmul accumulating directly into the (resident) f32 output
    block.  Bias is fused into the k==0 init; no scratch accumulator."""
    k = pl.program_id(2)

    @pl.when(k == 0)
    def _():
        o_ref[...] = jnp.broadcast_to(b_ref[...], o_ref.shape)

    o_ref[...] += jnp.dot(
        x_ref[...], w_ref[...], preferred_element_type=jnp.float32
    )


def gcn_tiled_kernel_acc(x_ref, w_ref, b_ref, o_ref, acc_ref):
    """Tiled matmul with an f32 scratch accumulator (non-f32 output dtype)."""
    k = pl.program_id(2)

    @pl.when(k == 0)
    def _():
        acc_ref[...] = jnp.broadcast_to(b_ref[...], acc_ref.shape)

    acc_ref[...] += jnp.dot(
        x_ref[...], w_ref[...], preferred_element_type=jnp.float32
    )

    @pl.when(k == pl.num_programs(2) - 1)
    def _():
        o_ref[...] = acc_ref[...].astype(o_ref.dtype)


# ---------------------------------------------------------------------------
# Wrapper
# ---------------------------------------------------------------------------
def graph_feature_map(
    x,
    weight,
    bias=None,
    *,
    tm=None,
    tn=None,
    tk=None,
    use_bf16=False,
    force_tiled=False,
):
    """Pallas implementation of GraphFeatureMap.forward: x @ weight + bias."""
    M, K = x.shape
    K2, N = weight.shape
    assert K == K2, f"shape mismatch: x {x.shape} vs weight {weight.shape}"
    out_dtype = x.dtype
    out_isz = jnp.dtype(out_dtype).itemsize

    compute_dtype = jnp.bfloat16 if use_bf16 else x.dtype
    isz = jnp.dtype(compute_dtype).itemsize

    if bias is None:
        b2d = jnp.zeros((1, N), jnp.float32)
    else:
        b2d = bias.astype(jnp.float32).reshape(1, N)

    x_c = x.astype(compute_dtype) if x.dtype != compute_dtype else x
    w_c = weight.astype(compute_dtype) if weight.dtype != compute_dtype else weight

    vmem_limit = _vmem_limit_bytes()
    budget = int(vmem_limit * 0.85)

    cost = pl.CostEstimate(
        flops=2 * M * K * N,
        transcendentals=0,
        bytes_accessed=M * K * isz + K * N * isz + N * 4 + M * N * out_isz,
    )

    # ---- fast-path eligibility: budget the WHOLE working set ----------------
    # resident operands (pipeline double-buffers even constant blocks) +
    # double-buffered x/out stream for at least a modest node tile.
    resident = 2 * K * N * isz + 2 * N * 4
    per_row = 2 * (K * isz + N * out_isz)
    min_rows = min(256, _round_up(M, 8))
    fast_ok = (not force_tiled) and (resident + per_row * min_rows <= budget)

    if fast_ok:
        # -------- fast path: weight + bias resident, 1-D grid over node tiles
        if tm is not None:
            tm_ = tm
        else:
            target = 1024 if (K * isz + N * out_isz) <= 8 * 1024 else 512
            cap = max(16, (budget - resident) // per_row)
            tm_ = min(target, (cap // 16) * 16)
            # v7x megacore: keep >=2 reasonably balanced node tiles for
            # larger graphs so the second TensorCore is not idle.
            if M > 512 and 2 * tm_ > M + 256:
                tm_ = max(256, _round_up(_cdiv(M, 2), 16))
        if tm_ >= M:
            tm_ = M                       # single full-extent tile
        else:
            tm_ = max(16, (tm_ // 16) * 16)
        grid = (_cdiv(M, tm_),)

        return pl.pallas_call(
            gcn_fast_kernel,
            out_shape=jax.ShapeDtypeStruct((M, N), out_dtype),
            grid_spec=pltpu.PrefetchScalarGridSpec(
                num_scalar_prefetch=0,
                grid=grid,
                in_specs=[
                    pl.BlockSpec((tm_, K), lambda i: (i, 0)),   # x (streamed)
                    pl.BlockSpec((K, N), lambda i: (0, 0)),     # weight (resident)
                    pl.BlockSpec((1, N), lambda i: (0, 0)),     # bias (resident)
                ],
                out_specs=pl.BlockSpec((tm_, N), lambda i: (i, 0)),
            ),
            compiler_params=pltpu.CompilerParams(
                dimension_semantics=("parallel",),
                vmem_limit_bytes=vmem_limit,
            ),
            cost_estimate=cost,
        )(x_c, w_c, b2d)

    # ---- general tiled path: (M, N, K) grid, reduction axis last ------------
    # Pick tk among {512, 256, 128} minimizing K zero-padding.
    if tk is not None:
        tk_ = tk
    else:
        tk_ = 128
        for cand in (512, 256):
            if _round_up(K, cand) - K <= 128:
                tk_ = cand
                break
    Kp = _round_up(K, tk_)
    if Kp != K:   # zero-pad K only when the reduction tile does not divide it
        x_c = jnp.pad(x_c, ((0, 0), (0, Kp - K)))
        w_c = jnp.pad(w_c, ((0, Kp - K), (0, 0)))

    tn_ = tn if tn is not None else (512 if N >= 512 else N)
    tm_ = tm if tm is not None else 512
    if tm_ >= M:
        tm_ = M
    else:
        tm_ = max(16, (tm_ // 16) * 16)

    grid = (_cdiv(M, tm_), _cdiv(N, tn_), Kp // tk_)

    if out_dtype == jnp.float32:
        kernel = gcn_tiled_kernel_f32out
        scratch = ()
    else:
        kernel = gcn_tiled_kernel_acc
        scratch = (pltpu.VMEM((tm_, tn_), jnp.float32),)

    return pl.pallas_call(
        kernel,
        out_shape=jax.ShapeDtypeStruct((M, N), out_dtype),
        grid_spec=pltpu.PrefetchScalarGridSpec(
            num_scalar_prefetch=0,
            grid=grid,
            in_specs=[
                pl.BlockSpec((tm_, tk_), lambda i, j, k: (i, k)),  # x
                pl.BlockSpec((tk_, tn_), lambda i, j, k: (k, j)),  # weight
                pl.BlockSpec((1, tn_), lambda i, j, k: (0, j)),    # bias
            ],
            out_specs=pl.BlockSpec((tm_, tn_), lambda i, j, k: (i, j)),
            scratch_shapes=scratch,
        ),
        compiler_params=pltpu.CompilerParams(
            dimension_semantics=("parallel", "parallel", "arbitrary"),
            vmem_limit_bytes=vmem_limit,
        ),
        cost_estimate=cost,
    )(x_c, w_c, b2d)


# ---------------------------------------------------------------------------
# Demo / self-test
# ---------------------------------------------------------------------------
if __name__ == "__main__":
    # 1) Small deterministic problem matching the module: 8 nodes, 32 -> 32.
    num_nodes, in_features, out_features = 8, 32, 32
    key = jax.random.PRNGKey(0)
    kx, kw, kb = jax.random.split(key, 3)
    stdv = 1.0 / math.sqrt(out_features)   # PyTorch reset_parameters()
    weight = jax.random.uniform(
        kw, (in_features, out_features), jnp.float32, minval=-stdv, maxval=stdv
    )
    bias = jax.random.uniform(
        kb, (out_features,), jnp.float32, minval=-stdv, maxval=stdv
    )
    x = jax.random.normal(kx, (num_nodes, in_features), jnp.float32)

    fwd = jax.jit(functools.partial(graph_feature_map))
    out = jax.block_until_ready(fwd(x, weight, bias))
    ref = x @ weight + bias
    assert out.shape == (num_nodes, out_features)
    assert jnp.allclose(out, ref, atol=1e-5, rtol=1e-5)

    # bias=None variant (module's bias=False mode).
    out_nb = jax.block_until_ready(graph_feature_map(x, weight, None))
    assert jnp.allclose(out_nb, x @ weight, atol=1e-5, rtol=1e-5)

    # 2) Larger fast-path problem: ragged last node tile + >=2 tiles (megacore).
    M2, K2, N2 = 1000, 320, 192
    k2x, k2w, k2b = jax.random.split(jax.random.PRNGKey(1), 3)
    x2 = jax.random.normal(k2x, (M2, K2), jnp.float32)
    w2 = jax.random.normal(k2w, (K2, N2), jnp.float32) * 0.05
    b2 = jax.random.normal(k2b, (N2,), jnp.float32) * 0.05
    out2 = jax.block_until_ready(graph_feature_map(x2, w2, b2))
    ref2 = x2 @ w2 + b2
    assert jnp.allclose(out2, ref2, atol=2e-2, rtol=2e-2)

    # 3) bf16-streamed fast path (f32 accumulation).
    out3 = jax.block_until_ready(graph_feature_map(x2[:256], w2, b2, use_bf16=True))
    ref3 = (x2[:256].astype(jnp.bfloat16).astype(jnp.float32)
            @ w2.astype(jnp.bfloat16).astype(jnp.float32)) + b2
    assert jnp.allclose(out3, ref3, atol=2e-2, rtol=2e-2)

    # 4) Forced tiled path, f32 output (direct-o_ref accumulation):
    #    K=320 -> tk=128 with zero-pad to 384, ragged M tiles of 256.
    M4 = 700
    x4 = jax.random.normal(jax.random.PRNGKey(2), (M4, K2), jnp.float32)
    out4 = jax.block_until_ready(
        graph_feature_map(x4, w2, b2, tm=256, force_tiled=True)
    )
    ref4 = x4 @ w2 + b2
    assert jnp.allclose(out4, ref4, atol=2e-2, rtol=2e-2)

    # 5) Forced tiled path, bf16 in/out (scratch-accumulator kernel), 3 K steps.
    x5 = jax.random.normal(jax.random.PRNGKey(3), (64, 640), jnp.float32)
    w5 = jax.random.normal(jax.random.PRNGKey(4), (640, 192), jnp.float32) * 0.05
    out5 = jax.block_until_ready(
        graph_feature_map(
            x5.astype(jnp.bfloat16), w5.astype(jnp.bfloat16), b2, force_tiled=True
        )
    )
    ref5 = (x5.astype(jnp.bfloat16).astype(jnp.float32)
            @ w5.astype(jnp.bfloat16).astype(jnp.float32)) + b2
    assert out5.dtype == jnp.bfloat16
    assert jnp.allclose(out5.astype(jnp.float32), ref5, atol=8e-2, rtol=8e-2)

    print("KERNEL_OK")
</pallas_src>

<mosaic_0001>
module attributes {stable_mosaic.version = 11 : i64} {
  func.func @gcn_fast_kernel(%arg0: i32, %arg1: memref<8x32xf32, #tpu.memory_space<vmem>>, %arg2: memref<32x32xf32, #tpu.memory_space<vmem>>, %arg3: memref<1x32xf32, #tpu.memory_space<vmem>>, %arg4: memref<8x32xf32, #tpu.memory_space<vmem>>) attributes {dimension_semantics = [#tpu.dimension_semantics<parallel>], iteration_bounds = array<i64: 1>, scalar_prefetch = 0 : i64, scratch_operands = 0 : i64, tpu.core_type = #tpu.core_type<tc>, window_params = [{transform_indices = @transform_0, window_bounds = array<i64: 8, 32>}, {pipeline_mode = #tpu.pipeline_mode<synchronous>, transform_indices = @transform_1, window_bounds = array<i64: 32, 32>}, {pipeline_mode = #tpu.pipeline_mode<synchronous>, transform_indices = @transform_2, window_bounds = array<i64: 1, 32>}, {transform_indices = @transform_3, window_bounds = array<i64: 8, 32>}]} {
    %c0 = arith.constant 0 : index
    %c0_0 = arith.constant 0 : index
    %0 = vector.load %arg1[%c0, %c0_0] : memref<8x32xf32, #tpu.memory_space<vmem>>, vector<8x32xf32>
    %c0_1 = arith.constant 0 : index
    %c0_2 = arith.constant 0 : index
    %1 = vector.load %arg2[%c0_1, %c0_2] : memref<32x32xf32, #tpu.memory_space<vmem>>, vector<32x32xf32>
    %cst = arith.constant dense<0.000000e+00> : vector<8x32xf32>
    %2 = tpu.matmul %0, %1, %cst {dimension_numbers = #tpu.dot_dimension_numbers<[1], [0], [0], [1], [0, 0, 1, 1], [], []>} : vector<8x32xf32>, vector<32x32xf32>, vector<8x32xf32> -> vector<8x32xf32>
    %c0_3 = arith.constant 0 : index
    %c0_4 = arith.constant 0 : index
    %3 = vector.load %arg3[%c0_3, %c0_4] : memref<1x32xf32, #tpu.memory_space<vmem>>, vector<1x32xf32>
    %4 = vector.broadcast %3 : vector<1x32xf32> to vector<8x32xf32>
    %5 = arith.addf %2, %4 : vector<8x32xf32>
    %c0_5 = arith.constant 0 : index
    %c0_6 = arith.constant 0 : index
    %6 = vector.load %arg4[%c0_5, %c0_6] : memref<8x32xf32, #tpu.memory_space<vmem>>, vector<8x32xf32>
    tpu.vector_store %arg4[%c0_5, %c0_6], %5 {strides = array<i32>} : memref<8x32xf32, #tpu.memory_space<vmem>>, vector<8x32xf32>,
    return
  }
  func.func @transform_0(%arg0: i32) -> (i32, i32) {
    %c0_i32 = arith.constant 0 : i32
    %c0_i32_0 = arith.constant 0 : i32
    return %arg0, %c0_i32 : i32, i32
  }
  func.func @transform_1(%arg0: i32) -> (i32, i32) {
    %c0_i32 = arith.constant 0 : i32
    %c0_i32_0 = arith.constant 0 : i32
    %c0_i32_1 = arith.constant 0 : i32
    return %c0_i32, %c0_i32_0 : i32, i32
  }
  func.func @transform_2(%arg0: i32) -> (i32, i32) {
    %c0_i32 = arith.constant 0 : i32
    %c0_i32_0 = arith.constant 0 : i32
    %c0_i32_1 = arith.constant 0 : i32
    return %c0_i32, %c0_i32_0 : i32, i32
  }
  func.func @transform_3(%arg0: i32) -> (i32, i32) {
    %c0_i32 = arith.constant 0 : i32
    %c0_i32_0 = arith.constant 0 : i32
    return %arg0, %c0_i32 : i32, i32
  }
}

</mosaic_0001>

<llo_original>
// kernel: graph_feature_map.1
$region0: #{graph_feature_map.1}
  #allocation0 [shape = 'u32[]', space=smem, size = 0x4, offset = 0x4, fixed_abs, tag = 'smem constant byte address 0x4 - core index']
  #allocation1 [shape = 'u32[144,128]{1,0:T(1,128)}', space=vmem, size = 0x12000, scoped, tag = 'internal scratch']
  %s0 = inlined_call_operand.hbm [shape: f32[8,32], index: 0, kind: input, shape index: {}]
  %s1 = inlined_call_operand.hbm [shape: f32[32,32], index: 1, kind: input, shape index: {}]
  %s2 = inlined_call_operand.vmem [shape: f32[1,32], index: 2, kind: input, shape index: {}]
  %s3 = inlined_call_operand.hbm [shape: f32[8,32], index: 3, kind: output, shape index: {}]
  %s4 = sld [smem:[#allocation0]]
  $region30: #{graph_feature_map.1} parent=0
    _
  %s6 = ssub.s32 1, %s4
  %s7 = scalar_select 0, %s6, %s4
  $region1: #{graph_feature_map.1} parent=0
    #allocation2 [shape = 'u8[4096]{0}', space=vmem, size = 0x1000, scoped, tag = 'input window, operand 0, single buffered']
    #allocation3 [shape = 's32[1]{0}', space=sflag, size = 0x4, scoped, tag = 'scoped memory for graph_feature_map.1']
    #allocation4 [shape = 's32[1]{0}', space=sflag, size = 0x4, scoped, tag = 'scoped memory for graph_feature_map.1']
    #allocation5 [shape = 'u8[16384]{0}', space=vmem, size = 0x4000, scoped, tag = 'input window, operand 1, single buffered']
    #allocation6 [shape = 's32[1]{0}', space=sflag, size = 0x4, scoped, tag = 'scoped memory for graph_feature_map.1']
    #allocation7 [shape = 'u8[4096]{0}', space=vmem, size = 0x1000, scoped, tag = 'output window, operand 0, single buffered']
    %8 = vsyncpa [#allocation3], 0
    %9 = vsyncpa [#allocation6], 0
    %10 = vsyncpa [#allocation4], 0
    // Predicated region
    $region2: #{graph_feature_map.1} parent=1 // pred_check
      _
    $region3: #{graph_feature_map.1} parent=1 // pred_check_branch
      %12 = sbr.rel (0) target = $region5
    $region4: #{graph_feature_map.1} parent=1 // pred_region
      %s14 = ssub.s32 128, 128
      %15 = vsyncadd [#allocation3], %s14
      %s17 = sshll.u32 [#allocation2], 4
      %s18 = int_to_ptr.vmem [resolvable:$true] %s17
      %20 = dma.hbm_to_vmem [thread:$0]  %s0, 128, %s18, [#allocation3]
    $region5: #{graph_feature_map.1} parent=1 // pred_fallthru
      _
    // Predicated region
    $region6: #{graph_feature_map.1} parent=1 // pred_check
      _
    $region7: #{graph_feature_map.1} parent=1 // pred_check_branch
      %22 = sbr.rel (0) target = $region9
    $region8: #{graph_feature_map.1} parent=1 // pred_region
      %s24 = ssub.s32 512, 512
      %25 = vsyncadd [#allocation6], %s24
      %s26 = sshll.u32 [#allocation5], 4
      %s27 = int_to_ptr.vmem [resolvable:$true] %s26
      %32 = dma.hbm_to_vmem [thread:$0]  %s1, 512, %s27, [#allocation6], 128, 128, 8
    $region9: #{graph_feature_map.1} parent=1 // pred_fallthru
      _
    // Predicated region
    $region10: #{graph_feature_map.1} parent=1 // pred_check
      _
    $region11: #{graph_feature_map.1} parent=1 // pred_check_branch
      %34 = sbr.rel (0) target = $region13
    $region12: #{graph_feature_map.1} parent=1 // pred_region
      _
    $region13: #{graph_feature_map.1} parent=1 // pred_fallthru
      _
    // Predicated region
    $region14: #{graph_feature_map.1} parent=1 // pred_check
      _
    $region15: #{graph_feature_map.1} parent=1 // pred_check_branch
      %36 = sbr.rel (0) target = $region17
    $region16: #{graph_feature_map.1} parent=1 // pred_region
      %37 = dma.done [#allocation3], 128
    $region17: #{graph_feature_map.1} parent=1 // pred_fallthru
      _
    // Predicated region
    $region18: #{graph_feature_map.1} parent=1 // pred_check
      _
    $region19: #{graph_feature_map.1} parent=1 // pred_check_branch
      %39 = sbr.rel (0) target = $region21
    $region20: #{graph_feature_map.1} parent=1 // pred_region
      %40 = dma.done [#allocation6], 512
    $region21: #{graph_feature_map.1} parent=1 // pred_fallthru
      _
    %v41 = vld [vmem:[#allocation2] sm:$0xff]
    %v42 = vld [vmem:[#allocation5] sm:$0xff]
    %v43 = vld [vmem:[#allocation5 + $0x8] sm:$0xff]
    %v44 = vld [vmem:[#allocation5 + $0x10] sm:$0xff]
    %v45 = vld [vmem:[#allocation5 + $0x18] sm:$0xff]
    %v46 = vld [vmem:[%s2] sm:$0x1]
    %v48 = vlaneseq
    %v49 = vshrl.u32 %v48, 7
    %v50 = vsub.s32 0, %v49
    %v51 = vrot.slane %v46, %v50
    %vm53 = vcmask 261120
    %v55 = vsel %vm53, %v41, 0
    %57 = vmatprep.subr.mxu0 0.0
    %58 = vmatpush1.msra.mxu0 %v42
    %59 = vmatprep.subr.mxu0 0.0
    %60 = vmatpush1.msra.mxu0 %v43
    %61 = vmatprep.subr.mxu0 0.0
    %62 = vmatpush1.msra.mxu0 %v44
    %63 = vmatprep.subr.mxu0 0.0
    %64 = vmatpush1.msra.mxu0 %v45
    %65 = vmatprep.subr.mxu0 0.0
    %66 = vmatpush1.msra.mxu0 0.0
    %67 = vmatprep.subr.mxu0 0.0
    %68 = vmatpush1.msra.mxu0 0.0
    %69 = vmatprep.subr.mxu0 0.0
    %70 = vmatpush1.msra.mxu0 0.0
    %71 = vmatprep.subr.mxu0 0.0
    %72 = vmatpush1.msra.mxu0 0.0
    %73 = vmatprep.subr.mxu0 0.0
    %74 = vmatpush1.msra.mxu0 0.0
    %75 = vmatprep.subr.mxu0 0.0
    %76 = vmatpush1.msra.mxu0 0.0
    %77 = vmatprep.subr.mxu0 0.0
    %78 = vmatpush1.msra.mxu0 0.0
    %79 = vmatprep.subr.mxu0 0.0
    %80 = vmatpush1.msra.mxu0 0.0
    %81 = vmatprep.subr.mxu0 0.0
    %82 = vmatpush1.msra.mxu0 0.0
    %83 = vmatprep.subr.mxu0 0.0
    %84 = vmatpush1.msra.mxu0 0.0
    %85 = vmatprep.subr.mxu0 0.0
    %86 = vmatpush1.msra.mxu0 0.0
    %87 = vmatprep.subr.mxu0 0.0
    %88 = vmatpush1.msra.mxu0 0.0
    %89 = vmatprep.subr.mxu0 0.0
    %90 = vmatpush1.msra.mxu0 0.0
    %91 = vmatprep.subr.mxu0 0.0
    %92 = vmatpush1.msra.mxu0 0.0
    %93 = vmatprep.subr.mxu0 0.0
    %94 = vmatpush1.msra.mxu0 0.0
    %95 = vmatprep.subr.mxu0 0.0
    %96 = vmatpush1.msra.mxu0 0.0
    %97 = vmatprep.subr.mxu0 0.0
    %98 = vmatpush1.msra.mxu0 0.0
    %99 = vmatprep.subr.mxu0 0.0
    %100 = vmatpush1.msra.mxu0 0.0
    %101 = vmatprep.subr.mxu0 0.0
    %102 = vmatpush1.msra.mxu0 0.0
    %103 = vmatprep.subr.mxu0 0.0
    %104 = vmatpush1.msra.mxu0 0.0
    %105 = vmatprep.subr.mxu0 0.0
    %106 = vmatpush1.msra.mxu0 0.0
    %107 = vmatprep.subr.mxu0 0.0
    %108 = vmatpush1.msra.mxu0 0.0
    %109 = vmatprep.subr.mxu0 0.0
    %110 = vmatpush1.msra.mxu0 0.0
    %111 = vmatprep.subr.mxu0 0.0
    %112 = vmatpush1.msra.mxu0 0.0
    %113 = vmatprep.subr.mxu0 0.0
    %114 = vmatpush1.msra.mxu0 0.0
    %115 = vmatprep.subr.mxu0 0.0
    %116 = vmatpush1.msra.mxu0 0.0
    %117 = vmatprep.subr.mxu0 0.0
    %118 = vmatpush1.msra.mxu0 0.0
    %119 = vmatprep.subr.mxu0 0.0
    %120 = vmatpush1.msra.mxu0 0.0
    %121 = vmatprep.mubr.f32.mxu0 0.0
    %122 = vmatmul.mubr.f32.gmra.mrb[0].mxu0 %v55
    %v123 = vpop.f32.mrb[0].mxu0
    %v124 = vadd.f32 %v51, %v123
    %v125 = vpop.f32.mrb[0].mxu0
    %126 = vdwg.mxu0
    %127 = vst.msk [vmem:[#allocation7] sm:$0xff] %vm53, %v124
    // Predicated region
    $region22: #{graph_feature_map.1} parent=1 // pred_check
      _
    $region23: #{graph_feature_map.1} parent=1 // pred_check_branch
      %129 = sbr.rel (0) target = $region25
    $region24: #{graph_feature_map.1} parent=1 // pred_region
      %s131 = ssub.s32 128, 128
      %132 = vsyncadd [#allocation4], %s131
      %s134 = sshll.u32 [#allocation7], 4
      %s135 = int_to_ptr.vmem [resolvable:$true] %s134
      %137 = dma.vmem_to_hbm [thread:$0]  %s135, 128, %s3, [#allocation4]
    $region25: #{graph_feature_map.1} parent=1 // pred_fallthru
      _
    // Predicated region
    $region26: #{graph_feature_map.1} parent=1 // pred_check
      _
    $region27: #{graph_feature_map.1} parent=1 // pred_check_branch
      %139 = sbr.rel (0) target = $region29
    $region28: #{graph_feature_map.1} parent=1 // pred_region
      %140 = dma.done [#allocation4], 128
    $region29: #{graph_feature_map.1} parent=1 // pred_fallthru
      _
    %141 = vsyncpa [#allocation3], 1
    %142 = vsyncpa [#allocation6], 1
    %143 = vsyncpa [#allocation4], 1

</llo_original>
